<compile_context>
chip_gen: v7x
topology: tpu7x:2x2x1
jax: 0.10.0
libtpu: 0.0.40
codegen_flags: <defaults>
</compile_context>

<pallas_src>
import functools

import jax
import jax.numpy as jnp
from jax.experimental import pallas as pl
from jax.experimental.pallas import tpu as pltpu

_LANE = 128
_SUBLANE = 8


def _tpu_num_cores():
    """Best-effort TensorCores per chip (2 on v7x, else 1). Conservative fallback = 1."""
    try:
        dev = jax.devices()[0]
        if dev.platform != "tpu":
            return 1
        kind = (getattr(dev, "device_kind", "") or "").lower()
        if "7" in kind:  # e.g. "tpu7x": 2 TensorCores per chip
            return 2
    except Exception:
        pass
    return 1


def _recons_loss_kernel(t_ref, r_ref, rr_ref, i_ref, o_ref, *,
                        tile_rows, acc_rows, rows_total, steps_per_shard,
                        sharded, may_be_partial):
    if sharded:
        shard = pl.program_id(0)
        step = pl.program_id(1)
    else:
        shard = 0
        step = pl.program_id(0)

    # o_ref is this shard's (acc_rows, W) partial-sum accumulator; the output block index is
    # constant along the inner "arbitrary" axis, so it stays resident in VMEM.
    @pl.when(step == 0)
    def _():
        o_ref[...] = jnp.zeros_like(o_ref)

    ab = jnp.abs(t_ref[...].astype(jnp.float32)
                 + r_ref[...].astype(jnp.float32)
                 + rr_ref[...].astype(jnp.float32)
                 - i_ref[...].astype(jnp.float32))

    chunks = tile_rows // acc_rows
    width = ab.shape[-1]

    def _partial(x):
        # (tile_rows, W) -> (chunks, acc_rows, W): splits the sublane dim at a multiple of 8,
        # so it is a free re-index (no relayout). The leading-axis sum gives
        # (acc_rows/8)*ceil(W/128) independent VPU add chains of depth `chunks`, instead of a
        # single ~tile_rows/8-deep dependent chain into one vreg.
        return jnp.sum(x.reshape(chunks, acc_rows, width), axis=0)

    if not may_be_partial:
        o_ref[...] += _partial(ab)
    else:
        block_idx = shard * steps_per_shard + step          # logical (unclamped) block index
        row0 = block_idx * tile_rows
        is_full = row0 + tile_rows <= rows_total

        @pl.when(is_full)
        def _():
            o_ref[...] += _partial(ab)

        @pl.when(jnp.logical_not(is_full))
        def _():
            # Ragged tail block, or a clamped duplicate block from the shard split: zero every
            # row at/past rows_total BEFORE reducing so garbage / re-read rows never contribute.
            # Mask cost (iota + cmp + select) is paid only here, never on full tiles.
            row_in_tile = jax.lax.broadcasted_iota(jnp.int32, ab.shape, 0)
            masked = jnp.where(row0 + row_in_tile < rows_total, ab, 0.0)
            o_ref[...] += _partial(masked)


def _as_rows(x):
    """Collapse to 2D (rows, W) keeping the native minor (lane) dim.

    Merging leading dims into the second-minor dim is layout-preserving on TPU whenever the
    original second-minor dim is a multiple of the 8-row sublane tile (true for typical NCHW
    images), so no HBM relayout copy is inserted — unlike a flat (-1, 128) reshape.
    """
    if x.ndim >= 2:
        # TODO(synk): when x.shape[-2] % 8 != 0, XLA may still insert one relayout copy for
        # this collapse; rare/tiny fallback, correctness unaffected.
        return x.reshape(-1, x.shape[-1])
    return x.reshape(1, -1)


def recons_loss(out_t, out_r, out_rr, input_i, *, block_bytes=None):
    """L1 loss: mean(|out_t + out_r + out_rr - input_i|), matching nn.L1Loss()."""
    assert out_t.shape == out_r.shape == out_rr.shape == input_i.shape
    n_elem = out_t.size

    t2, r2, rr2, i2 = (_as_rows(v) for v in (out_t, out_r, out_rr, input_i))
    rows, width = t2.shape

    n_cores = _tpu_num_cores()
    is_v7x = n_cores > 1

    # Block sizing targets the *padded* VMEM footprint (lane dim rounds up to 128).
    if block_bytes is None:
        block_bytes = (2 << 20) if is_v7x else (4 << 20)
    lane_pad = pl.cdiv(width, _LANE) * _LANE
    itemsize = t2.dtype.itemsize
    rows_budget = max(_SUBLANE,
                      (block_bytes // (lane_pad * itemsize)) // _SUBLANE * _SUBLANE)

    if rows >= _SUBLANE:
        tile_rows = min(rows_budget, (rows // _SUBLANE) * _SUBLANE)
        if tile_rows >= 64:
            tile_rows = (tile_rows // 64) * 64
            acc_rows = 64              # 8 vregs per lane-tile of accumulator
        else:
            acc_rows = _SUBLANE
    else:
        tile_rows = rows               # block == full (tiny) array -> allowed by full-dim rule
        acc_rows = rows

    num_tiles = pl.cdiv(rows, tile_rows)
    num_shards = n_cores if (n_cores > 1 and num_tiles >= n_cores) else 1
    steps_per_shard = pl.cdiv(num_tiles, num_shards)
    # Mask only needed if the (shard, step) sweep over-covers the real rows.
    may_be_partial = (num_shards * steps_per_shard * tile_rows) != rows

    if num_shards > 1:
        grid = (num_shards, steps_per_shard)

        def in_map(c, s):
            # Clamp so a block never *starts* past the array end; the in-kernel mask zeroes
            # duplicated / out-of-range rows.
            return (jnp.minimum(c * steps_per_shard + s, num_tiles - 1), 0)

        out_map = lambda c, s: (c, 0)
        # True cross-TensorCore split on v7x (plain "parallel" barely changes codegen).
        dim_sems = (getattr(pltpu, "CORE_PARALLEL", "parallel"), "arbitrary")
    else:
        grid = (num_tiles,)
        in_map = lambda s: (s, 0)
        out_map = lambda s: (0, 0)
        dim_sems = ("arbitrary",)

    in_spec = pl.BlockSpec((tile_rows, width), in_map)
    out_spec = pl.BlockSpec((acc_rows, width), out_map)

    kernel = functools.partial(
        _recons_loss_kernel,
        tile_rows=tile_rows,
        acc_rows=acc_rows,
        rows_total=rows,
        steps_per_shard=steps_per_shard,
        sharded=num_shards > 1,
        may_be_partial=may_be_partial,
    )

    # TODO(synk): if an xprof trace shows DMA gaps at step boundaries, add
    # pipeline_mode=pl.Buffered(3) on the input specs (still within the VMEM budget).
    partials = pl.pallas_call(
        kernel,
        out_shape=jax.ShapeDtypeStruct((num_shards * acc_rows, width), jnp.float32),
        grid_spec=pltpu.PrefetchScalarGridSpec(
            num_scalar_prefetch=0,
            grid=grid,
            in_specs=[in_spec, in_spec, in_spec, in_spec],
            out_specs=out_spec,
        ),
        compiler_params=pltpu.CompilerParams(
            dimension_semantics=dim_sems,
            vmem_limit_bytes=(48 << 20) if is_v7x else (64 << 20),
        ),
    )(t2, r2, rr2, i2)

    # One tiny final reduction + mean over the TRUE element count.
    return jnp.sum(partials) / jnp.float32(n_elem)


def _check(shape, key, block_bytes=None):
    k1, k2, k3, k4 = jax.random.split(key, 4)
    out_t = jax.random.normal(k1, shape, dtype=jnp.float32)
    out_r = jax.random.normal(k2, shape, dtype=jnp.float32)
    out_rr = jax.random.normal(k3, shape, dtype=jnp.float32)
    input_i = jax.random.normal(k4, shape, dtype=jnp.float32)

    loss = jax.block_until_ready(
        recons_loss(out_t, out_r, out_rr, input_i, block_bytes=block_bytes))
    ref = jnp.mean(jnp.abs(out_t + out_r + out_rr - input_i))
    assert jnp.allclose(loss, ref, rtol=1e-5, atol=1e-6), (shape, loss, ref)


if __name__ == "__main__":
    key = jax.random.PRNGKey(0)
    k_a, k_b, k_c, k_d = jax.random.split(key, 4)

    # Primary NCHW case: single block, no mask, layout-preserving reshape.
    _check((2, 4, 16, 16), k_a)
    # Multi-step accumulation with exact tiling (no mask branch emitted at all).
    _check((2, 4, 16, 16), k_b, block_bytes=16 * 1024)
    # Multi-step + ragged tail -> pl.when-gated mask path, widened (64 x W) accumulator.
    _check((2, 8, 40, 40), k_c, block_bytes=128 * 1024)
    # H % 8 != 0 (rare relayout fallback in the wrapper) + ragged tail, acc_rows = 8.
    _check((2, 4, 33, 37), k_d, block_bytes=16 * 1024)

    print("KERNEL_OK")
</pallas_src>

<mosaic_0001>
module attributes {stable_mosaic.version = 11 : i64} {
  func.func @_recons_loss_kernel(%arg0: i32, %arg1: memref<128x16xf32, #tpu.memory_space<vmem>>, %arg2: memref<128x16xf32, #tpu.memory_space<vmem>>, %arg3: memref<128x16xf32, #tpu.memory_space<vmem>>, %arg4: memref<128x16xf32, #tpu.memory_space<vmem>>, %arg5: memref<64x16xf32, #tpu.memory_space<vmem>>) attributes {dimension_semantics = [#tpu.dimension_semantics<arbitrary>], iteration_bounds = array<i64: 1>, scalar_prefetch = 0 : i64, scratch_operands = 0 : i64, tpu.core_type = #tpu.core_type<tc>, window_params = [{transform_indices = @transform_0, window_bounds = array<i64: 128, 16>}, {transform_indices = @transform_1, window_bounds = array<i64: 128, 16>}, {transform_indices = @transform_2, window_bounds = array<i64: 128, 16>}, {transform_indices = @transform_3, window_bounds = array<i64: 128, 16>}, {pipeline_mode = #tpu.pipeline_mode<synchronous>, transform_indices = @transform_4, window_bounds = array<i64: 64, 16>}]} {
    %c0_i32 = arith.constant 0 : i32
    %0 = arith.cmpi eq, %arg0, %c0_i32 : i32
    %1 = arith.extui %0 : i1 to i32
    %c0_i32_0 = arith.constant 0 : i32
    %2 = arith.cmpi ne, %1, %c0_i32_0 : i32
    scf.if %2 {
      %cst_12 = arith.constant 0.000000e+00 : f32
      %16 = vector.broadcast %cst_12 : f32 to vector<64x16xf32>
      %c0_13 = arith.constant 0 : index
      %c0_14 = arith.constant 0 : index
      %17 = vector.load %arg5[%c0_13, %c0_14] : memref<64x16xf32, #tpu.memory_space<vmem>>, vector<64x16xf32>
      tpu.vector_store %arg5[%c0_13, %c0_14], %16 {strides = array<i32>} : memref<64x16xf32, #tpu.memory_space<vmem>>, vector<64x16xf32>,
    } else {
    }
    %c0 = arith.constant 0 : index
    %c0_1 = arith.constant 0 : index
    %3 = vector.load %arg1[%c0, %c0_1] : memref<128x16xf32, #tpu.memory_space<vmem>>, vector<128x16xf32>
    %c0_2 = arith.constant 0 : index
    %c0_3 = arith.constant 0 : index
    %4 = vector.load %arg2[%c0_2, %c0_3] : memref<128x16xf32, #tpu.memory_space<vmem>>, vector<128x16xf32>
    %5 = arith.addf %3, %4 : vector<128x16xf32>
    %c0_4 = arith.constant 0 : index
    %c0_5 = arith.constant 0 : index
    %6 = vector.load %arg3[%c0_4, %c0_5] : memref<128x16xf32, #tpu.memory_space<vmem>>, vector<128x16xf32>
    %7 = arith.addf %5, %6 : vector<128x16xf32>
    %c0_6 = arith.constant 0 : index
    %c0_7 = arith.constant 0 : index
    %8 = vector.load %arg4[%c0_6, %c0_7] : memref<128x16xf32, #tpu.memory_space<vmem>>, vector<128x16xf32>
    %9 = arith.subf %7, %8 : vector<128x16xf32>
    %10 = math.absf %9 : vector<128x16xf32>
    %c0_8 = arith.constant 0 : index
    %c0_9 = arith.constant 0 : index
    %11 = vector.load %arg5[%c0_8, %c0_9] : memref<64x16xf32, #tpu.memory_space<vmem>>, vector<64x16xf32>
    %12 = vector.shape_cast %10 : vector<128x16xf32> to vector<2x64x16xf32>
    %cst = arith.constant dense<0.000000e+00> : vector<64x16xf32>
    %13 = vector.multi_reduction <add>, %12, %cst [0] : vector<2x64x16xf32> to vector<64x16xf32>
    %14 = arith.addf %11, %13 : vector<64x16xf32>
    %c0_10 = arith.constant 0 : index
    %c0_11 = arith.constant 0 : index
    %15 = vector.load %arg5[%c0_10, %c0_11] : memref<64x16xf32, #tpu.memory_space<vmem>>, vector<64x16xf32>
    tpu.vector_store %arg5[%c0_10, %c0_11], %14 {strides = array<i32>} : memref<64x16xf32, #tpu.memory_space<vmem>>, vector<64x16xf32>,
    return
  }
  func.func @transform_0(%arg0: i32) -> (i32, i32) {
    %c0_i32 = arith.constant 0 : i32
    %c0_i32_0 = arith.constant 0 : i32
    return %arg0, %c0_i32 : i32, i32
  }
  func.func @transform_1(%arg0: i32) -> (i32, i32) {
    %c0_i32 = arith.constant 0 : i32
    %c0_i32_0 = arith.constant 0 : i32
    return %arg0, %c0_i32 : i32, i32
  }
  func.func @transform_2(%arg0: i32) -> (i32, i32) {
    %c0_i32 = arith.constant 0 : i32
    %c0_i32_0 = arith.constant 0 : i32
    return %arg0, %c0_i32 : i32, i32
  }
  func.func @transform_3(%arg0: i32) -> (i32, i32) {
    %c0_i32 = arith.constant 0 : i32
    %c0_i32_0 = arith.constant 0 : i32
    return %arg0, %c0_i32 : i32, i32
  }
  func.func @transform_4(%arg0: i32) -> (i32, i32) {
    %c0_i32 = arith.constant 0 : i32
    %c0_i32_0 = arith.constant 0 : i32
    %c0_i32_1 = arith.constant 0 : i32
    return %c0_i32, %c0_i32_0 : i32, i32
  }
}

</mosaic_0001>

<llo_original>
// kernel: tpu_custom_call.1
$region0: #{tpu_custom_call.1}
  #allocation0 [shape = 'u32[]', space=smem, size = 0x4, offset = 0x4, fixed_abs, tag = 'smem constant byte address 0x4 - core index']
  #allocation1 [shape = 'u32[144,128]{1,0:T(1,128)}', space=vmem, size = 0x12000, scoped, tag = 'internal scratch']
  %s0 = inlined_call_operand.hbm [shape: f32[128,16], index: 0, kind: input, shape index: {}]
  %s1 = inlined_call_operand.hbm [shape: f32[128,16], index: 1, kind: input, shape index: {}]
  %s2 = inlined_call_operand.hbm [shape: f32[128,16], index: 2, kind: input, shape index: {}]
  %s3 = inlined_call_operand.hbm [shape: f32[128,16], index: 3, kind: input, shape index: {}]
  %s4 = inlined_call_operand.hbm [shape: f32[64,16], index: 4, kind: output, shape index: {}]
  %s5 = sld [smem:[#allocation0]]
  $region46: #{tpu_custom_call.1} parent=0
    _
  %s7 = ssub.s32 1, %s5
  %s8 = scalar_select 0, %s7, %s5
  $region1: #{tpu_custom_call.1} parent=0
    #allocation2 [shape = 'u8[65536]{0}', space=vmem, size = 0x10000, scoped, tag = 'input window, operand 0, single buffered']
    #allocation3 [shape = 's32[1]{0}', space=sflag, size = 0x4, scoped, tag = 'scoped memory for tpu_custom_call.1']
    #allocation4 [shape = 's32[1]{0}', space=sflag, size = 0x4, scoped, tag = 'scoped memory for tpu_custom_call.1']
    #allocation5 [shape = 'u8[65536]{0}', space=vmem, size = 0x10000, scoped, tag = 'input window, operand 1, single buffered']
    #allocation6 [shape = 's32[1]{0}', space=sflag, size = 0x4, scoped, tag = 'scoped memory for tpu_custom_call.1']
    #allocation7 [shape = 'u8[65536]{0}', space=vmem, size = 0x10000, scoped, tag = 'input window, operand 2, single buffered']
    #allocation8 [shape = 'u8[65536]{0}', space=vmem, size = 0x10000, scoped, tag = 'input window, operand 3, single buffered']
    #allocation9 [shape = 's32[1]{0}', space=sflag, size = 0x4, scoped, tag = 'scoped memory for tpu_custom_call.1']
    #allocation10 [shape = 'u8[32768]{0}', space=vmem, size = 0x8000, scoped, tag = 'output window, operand 0, single buffered']
    %9 = vsyncpa [#allocation3], 0
    %10 = vsyncpa [#allocation6], 0
    %11 = vsyncpa [#allocation9], 0
    %12 = vsyncpa [#allocation4], 0
    // Predicated region
    $region2: #{tpu_custom_call.1} parent=1 // pred_check
      _
    $region3: #{tpu_custom_call.1} parent=1 // pred_check_branch
      %14 = sbr.rel (0) target = $region5
    $region4: #{tpu_custom_call.1} parent=1 // pred_region
      %s16 = ssub.s32 2048, 2048
      %17 = vsyncadd [#allocation3], %s16
      %s18 = sshll.u32 [#allocation2], 4
      %s19 = int_to_ptr.vmem [resolvable:$true] %s18
      %24 = dma.hbm_to_vmem [thread:$0]  %s0, 2048, %s19, [#allocation3], 128, 128, 8
    $region5: #{tpu_custom_call.1} parent=1 // pred_fallthru
      _
    // Predicated region
    $region6: #{tpu_custom_call.1} parent=1 // pred_check
      _
    $region7: #{tpu_custom_call.1} parent=1 // pred_check_branch
      %26 = sbr.rel (0) target = $region9
    $region8: #{tpu_custom_call.1} parent=1 // pred_region
      %s28 = ssub.s32 2048, 2048
      %29 = vsyncadd [#allocation6], %s28
      %s30 = sshll.u32 [#allocation5], 4
      %s31 = int_to_ptr.vmem [resolvable:$true] %s30
      %36 = dma.hbm_to_vmem [thread:$0]  %s1, 2048, %s31, [#allocation6], 128, 128, 8
    $region9: #{tpu_custom_call.1} parent=1 // pred_fallthru
      _
    // Predicated region
    $region10: #{tpu_custom_call.1} parent=1 // pred_check
      _
    $region11: #{tpu_custom_call.1} parent=1 // pred_check_branch
      %38 = sbr.rel (0) target = $region13
    $region12: #{tpu_custom_call.1} parent=1 // pred_region
      %s40 = ssub.s32 2048, 2048
      %41 = vsyncadd [#allocation6], %s40
      %s42 = sshll.u32 [#allocation7], 4
      %s43 = int_to_ptr.vmem [resolvable:$true] %s42
      %48 = dma.hbm_to_vmem [thread:$0]  %s2, 2048, %s43, [#allocation6], 128, 128, 8
    $region13: #{tpu_custom_call.1} parent=1 // pred_fallthru
      _
    // Predicated region
    $region14: #{tpu_custom_call.1} parent=1 // pred_check
      _
    $region15: #{tpu_custom_call.1} parent=1 // pred_check_branch
      %50 = sbr.rel (0) target = $region17
    $region16: #{tpu_custom_call.1} parent=1 // pred_region
      %s52 = ssub.s32 2048, 2048
      %53 = vsyncadd [#allocation9], %s52
      %s54 = sshll.u32 [#allocation8], 4
      %s55 = int_to_ptr.vmem [resolvable:$true] %s54
      %60 = dma.hbm_to_vmem [thread:$0]  %s3, 2048, %s55, [#allocation9], 128, 128, 8
    $region17: #{tpu_custom_call.1} parent=1 // pred_fallthru
      _
    // Predicated region
    $region18: #{tpu_custom_call.1} parent=1 // pred_check
      _
    $region19: #{tpu_custom_call.1} parent=1 // pred_check_branch
      %62 = sbr.rel (0) target = $region21
    $region20: #{tpu_custom_call.1} parent=1 // pred_region
      %63 = dma.done [#allocation3], 2048
    $region21: #{tpu_custom_call.1} parent=1 // pred_fallthru
      _
    // Predicated region
    $region22: #{tpu_custom_call.1} parent=1 // pred_check
      _
    $region23: #{tpu_custom_call.1} parent=1 // pred_check_branch
      %65 = sbr.rel (0) target = $region25
    $region24: #{tpu_custom_call.1} parent=1 // pred_region
      %66 = dma.done [#allocation6], 2048
    $region25: #{tpu_custom_call.1} parent=1 // pred_fallthru
      _
    // Predicated region
    $region26: #{tpu_custom_call.1} parent=1 // pred_check
      _
    $region27: #{tpu_custom_call.1} parent=1 // pred_check_branch
      %68 = sbr.rel (0) target = $region29
    $region28: #{tpu_custom_call.1} parent=1 // pred_region
      %69 = dma.done [#allocation6], 2048
    $region29: #{tpu_custom_call.1} parent=1 // pred_fallthru
      _
    // Predicated region
    $region30: #{tpu_custom_call.1} parent=1 // pred_check
      _
    $region31: #{tpu_custom_call.1} parent=1 // pred_check_branch
      %71 = sbr.rel (0) target = $region33
    $region32: #{tpu_custom_call.1} parent=1 // pred_region
      %72 = dma.done [#allocation9], 2048
    $region33: #{tpu_custom_call.1} parent=1 // pred_fallthru
      _
    %p73 = scmp.eq.s32.totalorder 0, 0
    // Predicated region
    $region34: #{tpu_custom_call.1} parent=1 // pred_check
      %p74 = pneg %p73
    $region35: #{tpu_custom_call.1} parent=1 // pred_check_branch
      %76 = sbr.rel (%p74) target = $region37
    $region36: #{tpu_custom_call.1} parent=1 // pred_region
      %vm77 = vcmask 130048
      %78 = vst.msk [vmem:[#allocation10] sm:$0xff] %vm77, 0.0
      %79 = vst.msk [vmem:[#allocation10 + $0x8] sm:$0xff] %vm77, 0.0
      %80 = vst.msk [vmem:[#allocation10 + $0x10] sm:$0xff] %vm77, 0.0
      %81 = vst.msk [vmem:[#allocation10 + $0x18] sm:$0xff] %vm77, 0.0
      %82 = vst.msk [vmem:[#allocation10 + $0x20] sm:$0xff] %vm77, 0.0
      %83 = vst.msk [vmem:[#allocation10 + $0x28] sm:$0xff] %vm77, 0.0
      %84 = vst.msk [vmem:[#allocation10 + $0x30] sm:$0xff] %vm77, 0.0
      %85 = vst.msk [vmem:[#allocation10 + $0x38] sm:$0xff] %vm77, 0.0
    $region37: #{tpu_custom_call.1} parent=1 // pred_fallthru
      _
    %v86 = vld [vmem:[#allocation2] sm:$0xff]
    %v87 = vld [vmem:[#allocation2 + $0x8] sm:$0xff]
    %v88 = vld [vmem:[#allocation2 + $0x10] sm:$0xff]
    %v89 = vld [vmem:[#allocation2 + $0x18] sm:$0xff]
    %v90 = vld [vmem:[#allocation2 + $0x20] sm:$0xff]
    %v91 = vld [vmem:[#allocation2 + $0x28] sm:$0xff]
    %v92 = vld [vmem:[#allocation2 + $0x30] sm:$0xff]
    %v93 = vld [vmem:[#allocation2 + $0x38] sm:$0xff]
    %v94 = vld [vmem:[#allocation2 + $0x40] sm:$0xff]
    %v95 = vld [vmem:[#allocation2 + $0x48] sm:$0xff]
    %v96 = vld [vmem:[#allocation2 + $0x50] sm:$0xff]
    %v97 = vld [vmem:[#allocation2 + $0x58] sm:$0xff]
    %v98 = vld [vmem:[#allocation2 + $0x60] sm:$0xff]
    %v99 = vld [vmem:[#allocation2 + $0x68] sm:$0xff]
    %v100 = vld [vmem:[#allocation2 + $0x70] sm:$0xff]
    %v101 = vld [vmem:[#allocation2 + $0x78] sm:$0xff]
    %v102 = vld [vmem:[#allocation5] sm:$0xff]
    %v103 = vld [vmem:[#allocation5 + $0x8] sm:$0xff]
    %v104 = vld [vmem:[#allocation5 + $0x10] sm:$0xff]
    %v105 = vld [vmem:[#allocation5 + $0x18] sm:$0xff]
    %v106 = vld [vmem:[#allocation5 + $0x20] sm:$0xff]
    %v107 = vld [vmem:[#allocation5 + $0x28] sm:$0xff]
    %v108 = vld [vmem:[#allocation5 + $0x30] sm:$0xff]
    %v109 = vld [vmem:[#allocation5 + $0x38] sm:$0xff]
    %v110 = vld [vmem:[#allocation5 + $0x40] sm:$0xff]
    %v111 = vld [vmem:[#allocation5 + $0x48] sm:$0xff]
    %v112 = vld [vmem:[#allocation5 + $0x50] sm:$0xff]
    %v113 = vld [vmem:[#allocation5 + $0x58] sm:$0xff]
    %v114 = vld [vmem:[#allocation5 + $0x60] sm:$0xff]
    %v115 = vld [vmem:[#allocation5 + $0x68] sm:$0xff]
    %v116 = vld [vmem:[#allocation5 + $0x70] sm:$0xff]
    %v117 = vld [vmem:[#allocation5 + $0x78] sm:$0xff]
    %v118 = vadd.f32 %v86, %v102
    %v119 = vadd.f32 %v87, %v103
    %v120 = vadd.f32 %v88, %v104
    %v121 = vadd.f32 %v89, %v105
    %v122 = vadd.f32 %v90, %v106
    %v123 = vadd.f32 %v91, %v107
    %v124 = vadd.f32 %v92, %v108
    %v125 = vadd.f32 %v93, %v109
    %v126 = vadd.f32 %v94, %v110
    %v127 = vadd.f32 %v95, %v111
    %v128 = vadd.f32 %v96, %v112
    %v129 = vadd.f32 %v97, %v113
    %v130 = vadd.f32 %v98, %v114
    %v131 = vadd.f32 %v99, %v115
    %v132 = vadd.f32 %v100, %v116
    %v133 = vadd.f32 %v101, %v117
    %v134 = vld [vmem:[#allocation7] sm:$0xff]
    %v135 = vld [vmem:[#allocation7 + $0x8] sm:$0xff]
    %v136 = vld [vmem:[#allocation7 + $0x10] sm:$0xff]
    %v137 = vld [vmem:[#allocation7 + $0x18] sm:$0xff]
    %v138 = vld [vmem:[#allocation7 + $0x20] sm:$0xff]
    %v139 = vld [vmem:[#allocation7 + $0x28] sm:$0xff]
    %v140 = vld [vmem:[#allocation7 + $0x30] sm:$0xff]
    %v141 = vld [vmem:[#allocation7 + $0x38] sm:$0xff]
    %v142 = vld [vmem:[#allocation7 + $0x40] sm:$0xff]
    %v143 = vld [vmem:[#allocation7 + $0x48] sm:$0xff]
    %v144 = vld [vmem:[#allocation7 + $0x50] sm:$0xff]
    %v145 = vld [vmem:[#allocation7 + $0x58] sm:$0xff]
    %v146 = vld [vmem:[#allocation7 + $0x60] sm:$0xff]
    %v147 = vld [vmem:[#allocation7 + $0x68] sm:$0xff]
    %v148 = vld [vmem:[#allocation7 + $0x70] sm:$0xff]
    %v149 = vld [vmem:[#allocation7 + $0x78] sm:$0xff]
    %v150 = vadd.f32 %v118, %v134
    %v151 = vadd.f32 %v119, %v135
    %v152 = vadd.f32 %v120, %v136
    %v153 = vadd.f32 %v121, %v137
    %v154 = vadd.f32 %v122, %v138
    %v155 = vadd.f32 %v123, %v139
    %v156 = vadd.f32 %v124, %v140
    %v157 = vadd.f32 %v125, %v141
    %v158 = vadd.f32 %v126, %v142
    %v159 = vadd.f32 %v127, %v143
    %v160 = vadd.f32 %v128, %v144
    %v161 = vadd.f32 %v129, %v145
    %v162 = vadd.f32 %v130, %v146
    %v163 = vadd.f32 %v131, %v147
    %v164 = vadd.f32 %v132, %v148
    %v165 = vadd.f32 %v133, %v149
    %v166 = vld [vmem:[#allocation8] sm:$0xff]
    %v167 = vld [vmem:[#allocation8 + $0x8] sm:$0xff]
    %v168 = vld [vmem:[#allocation8 + $0x10] sm:$0xff]
    %v169 = vld [vmem:[#allocation8 + $0x18] sm:$0xff]
    %v170 = vld [vmem:[#allocation8 + $0x20] sm:$0xff]
    %v171 = vld [vmem:[#allocation8 + $0x28] sm:$0xff]
    %v172 = vld [vmem:[#allocation8 + $0x30] sm:$0xff]
    %v173 = vld [vmem:[#allocation8 + $0x38] sm:$0xff]
    %v174 = vld [vmem:[#allocation8 + $0x40] sm:$0xff]
    %v175 = vld [vmem:[#allocation8 + $0x48] sm:$0xff]
    %v176 = vld [vmem:[#allocation8 + $0x50] sm:$0xff]
    %v177 = vld [vmem:[#allocation8 + $0x58] sm:$0xff]
    %v178 = vld [vmem:[#allocation8 + $0x60] sm:$0xff]
    %v179 = vld [vmem:[#allocation8 + $0x68] sm:$0xff]
    %v180 = vld [vmem:[#allocation8 + $0x70] sm:$0xff]
    %v181 = vld [vmem:[#allocation8 + $0x78] sm:$0xff]
    %v182 = vsub.f32 %v150, %v166
    %v183 = vsub.f32 %v151, %v167
    %v184 = vsub.f32 %v152, %v168
    %v185 = vsub.f32 %v153, %v169
    %v186 = vsub.f32 %v154, %v170
    %v187 = vsub.f32 %v155, %v171
    %v188 = vsub.f32 %v156, %v172
    %v189 = vsub.f32 %v157, %v173
    %v190 = vsub.f32 %v158, %v174
    %v191 = vsub.f32 %v159, %v175
    %v192 = vsub.f32 %v160, %v176
    %v193 = vsub.f32 %v161, %v177
    %v194 = vsub.f32 %v162, %v178
    %v195 = vsub.f32 %v163, %v179
    %v196 = vsub.f32 %v164, %v180
    %v197 = vsub.f32 %v165, %v181
    %v198 = vand.u32 2147483647, %v182
    %v199 = vand.u32 2147483647, %v183
    %v200 = vand.u32 2147483647, %v184
    %v201 = vand.u32 2147483647, %v185
    %v202 = vand.u32 2147483647, %v186
    %v203 = vand.u32 2147483647, %v187
    %v204 = vand.u32 2147483647, %v188
    %v205 = vand.u32 2147483647, %v189
    %v206 = vand.u32 2147483647, %v190
    %v207 = vand.u32 2147483647, %v191
    %v208 = vand.u32 2147483647, %v192
    %v209 = vand.u32 2147483647, %v193
    %v210 = vand.u32 2147483647, %v194
    %v211 = vand.u32 2147483647, %v195
    %v212 = vand.u32 2147483647, %v196
    %v213 = vand.u32 2147483647, %v197
    %v214 = vld [vmem:[#allocation10] sm:$0xff]
    %v215 = vld [vmem:[#allocation10 + $0x8] sm:$0xff]
    %v216 = vld [vmem:[#allocation10 + $0x10] sm:$0xff]
    %v217 = vld [vmem:[#allocation10 + $0x18] sm:$0xff]
    %v218 = vld [vmem:[#allocation10 + $0x20] sm:$0xff]
    %v219 = vld [vmem:[#allocation10 + $0x28] sm:$0xff]
    %v220 = vld [vmem:[#allocation10 + $0x30] sm:$0xff]
    %v221 = vld [vmem:[#allocation10 + $0x38] sm:$0xff]
    %vm222 = vcmask 130048
    %v223 = vsel %vm222, %v198, 0.0
    %v224 = vsel %vm222, %v206, 0.0
    %v225 = vadd.f32 %v223, %v224
    %v226 = vsel %vm222, %v199, 0.0
    %v227 = vsel %vm222, %v207, 0.0
    %v228 = vadd.f32 %v226, %v227
    %v229 = vsel %vm222, %v200, 0.0
    %v230 = vsel %vm222, %v208, 0.0
    %v231 = vadd.f32 %v229, %v230
    %v232 = vsel %vm222, %v201, 0.0
    %v233 = vsel %vm222, %v209, 0.0
    %v234 = vadd.f32 %v232, %v233
    %v235 = vsel %vm222, %v202, 0.0
    %v236 = vsel %vm222, %v210, 0.0
    %v237 = vadd.f32 %v235, %v236
    %v238 = vsel %vm222, %v203, 0.0
    %v239 = vsel %vm222, %v211, 0.0
    %v240 = vadd.f32 %v238, %v239
    %v241 = vsel %vm222, %v204, 0.0
    %v242 = vsel %vm222, %v212, 0.0
    %v243 = vadd.f32 %v241, %v242
    %v244 = vsel %vm222, %v205, 0.0
    %v245 = vsel %vm222, %v213, 0.0
    %v246 = vadd.f32 %v244, %v245
    %v247 = vadd.f32 %v214, %v225
    %v248 = vadd.f32 %v215, %v228
    %v249 = vadd.f32 %v216, %v231
    %v250 = vadd.f32 %v217, %v234
    %v251 = vadd.f32 %v218, %v237
    %v252 = vadd.f32 %v219, %v240
    %v253 = vadd.f32 %v220, %v243
    %v254 = vadd.f32 %v221, %v246
    %255 = vst.msk [vmem:[#allocation10] sm:$0xff] %vm222, %v247
    %256 = vst.msk [vmem:[#allocation10 + $0x8] sm:$0xff] %vm222, %v248
    %257 = vst.msk [vmem:[#allocation10 + $0x10] sm:$0xff] %vm222, %v249
    %258 = vst.msk [vmem:[#allocation10 + $0x18] sm:$0xff] %vm222, %v250
    %259 = vst.msk [vmem:[#allocation10 + $0x20] sm:$0xff] %vm222, %v251
    %260 = vst.msk [vmem:[#allocation10 + $0x28] sm:$0xff] %vm222, %v252
    %261 = vst.msk [vmem:[#allocation10 + $0x30] sm:$0xff] %vm222, %v253
    %262 = vst.msk [vmem:[#allocation10 + $0x38] sm:$0xff] %vm222, %v254
    // Predicated region
    $region38: #{tpu_custom_call.1} parent=1 // pred_check
      _
    $region39: #{tpu_custom_call.1} parent=1 // pred_check_branch
      %264 = sbr.rel (0) target = $region41
    $region40: #{tpu_custom_call.1} parent=1 // pred_region
      %s266 = ssub.s32 1024, 1024
      %267 = vsyncadd [#allocation4], %s266
      %s268 = sshll.u32 [#allocation10], 4
      %s269 = int_to_ptr.vmem [resolvable:$true] %s268
      %274 = dma.vmem_to_hbm [thread:$0]  %s269, 1024, %s4, [#allocation4], 128, 128, 8
    $region41: #{tpu_custom_call.1} parent=1 // pred_fallthru
      _
    // Predicated region
    $region42: #{tpu_custom_call.1} parent=1 // pred_check
      _
    $region43: #{tpu_custom_call.1} parent=1 // pred_check_branch
      %276 = sbr.rel (0) target = $region45
    $region44: #{tpu_custom_call.1} parent=1 // pred_region
      %277 = dma.done [#allocation4], 1024
    $region45: #{tpu_custom_call.1} parent=1 // pred_fallthru
      _
    %278 = vsyncpa [#allocation3], 1
    %279 = vsyncpa [#allocation6], 1
    %280 = vsyncpa [#allocation9], 1
    %281 = vsyncpa [#allocation4], 1

</llo_original>
